<compile_context>
chip_gen: v7x
topology: tpu7x:2x2x1
jax: 0.10.0
libtpu: 0.0.40
codegen_flags: <defaults>
</compile_context>

<pallas_src>
import jax
import jax.numpy as jnp
from jax.experimental import pallas as pl
from jax.experimental.pallas import tpu as pltpu

IN_DIM = 256       # 128 * 2
HID = 128
OUT_DIM = 2
OUT_PAD = 128      # pad last Linear's output to a full lane width (lane-dense store)
TB_MAX = 512       # batch tile (sublane multiple); sweepable 256..1024


def _round_up(x, m):
    return ((x + m - 1) // m) * m


def _gaze_adaptor_kernel(x_ref, dt_ref, w1_ref, b1_ref, w2_ref, b2_ref,
                         w3_ref, b3_ref, o_ref):
    # (TB, 256) -> bf16 for the MXU; accumulate in f32.
    x = x_ref[...].astype(jnp.bfloat16)

    h1 = jnp.dot(x, w1_ref[...], preferred_element_type=jnp.float32)
    h1 = jnp.maximum(h1 + b1_ref[...], 0.0)                              # (TB, 128) f32

    h2 = jnp.dot(h1.astype(jnp.bfloat16), w2_ref[...],
                 preferred_element_type=jnp.float32)
    h2 = jnp.maximum(h2 + b2_ref[...], 0.0)                              # (TB, 128) f32

    out = jnp.dot(h2.astype(jnp.bfloat16), w3_ref[...],
                  preferred_element_type=jnp.float32)
    out = out + b3_ref[...]                                              # (TB, 128); cols >=2 are zero

    # Broadcast-multiply by data_type over the full padded block; store lane-dense.
    o_ref[...] = (out * dt_ref[...]).astype(o_ref.dtype)


@jax.jit
def gaze_adaptor_forward(x_feat, data_type, params):
    """x_feat: (B, 256) f32, data_type: (B, 1) f32 -> (B, 2) f32."""
    w1, b1, w2, b2, w3, b3 = params
    B = x_feat.shape[0]

    # Batch tile: big enough to fill MXU rows / amortize grid-step overhead, but never
    # (much) larger than B itself.  No host-side padding of x_feat / data_type.
    TB = min(TB_MAX, _round_up(B, 8))
    grid = (pl.cdiv(B, TB),)

    # Weights in bf16 (tiny, resident in VMEM across all grid steps); biases stay f32.
    w1b = w1.astype(jnp.bfloat16)
    w2b = w2.astype(jnp.bfloat16)
    w3p = jnp.zeros((HID, OUT_PAD), jnp.bfloat16).at[:, :OUT_DIM].set(
        w3.astype(jnp.bfloat16))
    b1r = b1.reshape(1, HID).astype(jnp.float32)
    b2r = b2.reshape(1, HID).astype(jnp.float32)
    b3p = jnp.zeros((1, OUT_PAD), jnp.float32).at[:, :OUT_DIM].set(b3.reshape(1, -1))

    out = pl.pallas_call(
        _gaze_adaptor_kernel,
        out_shape=jax.ShapeDtypeStruct((B, OUT_PAD), jnp.float32),
        grid_spec=pltpu.PrefetchScalarGridSpec(
            num_scalar_prefetch=0,
            grid=grid,
            in_specs=[
                pl.BlockSpec((TB, IN_DIM), lambda i: (i, 0)),      # x_feat tile
                pl.BlockSpec((TB, 1), lambda i: (i, 0)),           # data_type tile
                pl.BlockSpec((IN_DIM, HID), lambda i: (0, 0)),     # W1 (bf16)
                pl.BlockSpec((1, HID), lambda i: (0, 0)),          # b1
                pl.BlockSpec((HID, HID), lambda i: (0, 0)),        # W2 (bf16)
                pl.BlockSpec((1, HID), lambda i: (0, 0)),          # b2
                pl.BlockSpec((HID, OUT_PAD), lambda i: (0, 0)),    # W3 (bf16, padded)
                pl.BlockSpec((1, OUT_PAD), lambda i: (0, 0)),      # b3 (padded)
            ],
            out_specs=pl.BlockSpec((TB, OUT_PAD), lambda i: (i, 0)),   # lane-dense out
        ),
        compiler_params=pltpu.CompilerParams(
            dimension_semantics=("parallel",)),
    )(x_feat, data_type, w1b, b1r, w2b, b2r, w3p, b3p)

    # Only the first 2 lanes carry real gaze deltas.
    return out[:, :OUT_DIM]


def init_params(key):
    """Deterministic init mimicking PyTorch nn.Linear default (uniform +-1/sqrt(fan_in)).

    Weights are stored as (in_features, out_features)."""
    ks = jax.random.split(key, 6)

    def lin(kw, kb, fan_in, fan_out):
        bound = 1.0 / jnp.sqrt(fan_in)
        w = jax.random.uniform(kw, (fan_in, fan_out), jnp.float32, -bound, bound)
        b = jax.random.uniform(kb, (fan_out,), jnp.float32, -bound, bound)
        return w, b

    w1, b1 = lin(ks[0], ks[1], IN_DIM, HID)
    w2, b2 = lin(ks[2], ks[3], HID, HID)
    w3, b3 = lin(ks[4], ks[5], HID, OUT_DIM)
    return (w1, b1, w2, b2, w3, b3)


def reference_forward(x_feat, data_type, params):
    """Pure-JAX reference matching the kernel's numerics (bf16 matmuls, f32 accumulation)."""
    w1, b1, w2, b2, w3, b3 = params

    def mm(a, w):
        return jnp.dot(a.astype(jnp.bfloat16), w.astype(jnp.bfloat16),
                       preferred_element_type=jnp.float32)

    h = jnp.maximum(mm(x_feat, w1) + b1, 0.0)
    h = jnp.maximum(mm(h, w2) + b2, 0.0)
    return (mm(h, w3) + b3) * data_type


if __name__ == "__main__":
    key = jax.random.PRNGKey(0)
    k_p, k_x, k_d = jax.random.split(key, 3)

    params = init_params(k_p)

    # B=8: single exact block.  B=36: partial boundary block (batch tail handling).
    for B in (8, 36):
        kx = jax.random.fold_in(k_x, B)
        kd = jax.random.fold_in(k_d, B)
        x_feat = jax.random.normal(kx, (B, IN_DIM), jnp.float32)
        # data_type: +1 / -1 flags per sample, broadcast over the 2 gaze components.
        data_type = jnp.sign(jax.random.normal(kd, (B, 1), jnp.float32))

        out = gaze_adaptor_forward(x_feat, data_type, params)
        out = jax.block_until_ready(out)

        ref = reference_forward(x_feat, data_type, params)
        assert out.shape == (B, OUT_DIM), out.shape
        err = float(jnp.max(jnp.abs(out - ref)))
        assert jnp.allclose(out, ref, atol=2e-2, rtol=2e-2), err

    print("KERNEL_OK")
</pallas_src>

<mosaic_0001>
module attributes {stable_mosaic.version = 11 : i64} {
  func.func @_gaze_adaptor_kernel(%arg0: i32, %arg1: memref<8x256xf32, #tpu.memory_space<vmem>>, %arg2: memref<8x1xf32, #tpu.memory_space<vmem>>, %arg3: memref<256x128xbf16, #tpu.memory_space<vmem>>, %arg4: memref<1x128xf32, #tpu.memory_space<vmem>>, %arg5: memref<128x128xbf16, #tpu.memory_space<vmem>>, %arg6: memref<1x128xf32, #tpu.memory_space<vmem>>, %arg7: memref<128x128xbf16, #tpu.memory_space<vmem>>, %arg8: memref<1x128xf32, #tpu.memory_space<vmem>>, %arg9: memref<8x128xf32, #tpu.memory_space<vmem>>) attributes {dimension_semantics = [#tpu.dimension_semantics<parallel>], iteration_bounds = array<i64: 1>, scalar_prefetch = 0 : i64, scratch_operands = 0 : i64, tpu.core_type = #tpu.core_type<tc>, window_params = [{transform_indices = @transform_0, window_bounds = array<i64: 8, 256>}, {transform_indices = @transform_1, window_bounds = array<i64: 8, 1>}, {pipeline_mode = #tpu.pipeline_mode<synchronous>, transform_indices = @transform_2, window_bounds = array<i64: 256, 128>}, {pipeline_mode = #tpu.pipeline_mode<synchronous>, transform_indices = @transform_3, window_bounds = array<i64: 1, 128>}, {pipeline_mode = #tpu.pipeline_mode<synchronous>, transform_indices = @transform_4, window_bounds = array<i64: 128, 128>}, {pipeline_mode = #tpu.pipeline_mode<synchronous>, transform_indices = @transform_5, window_bounds = array<i64: 1, 128>}, {pipeline_mode = #tpu.pipeline_mode<synchronous>, transform_indices = @transform_6, window_bounds = array<i64: 128, 128>}, {pipeline_mode = #tpu.pipeline_mode<synchronous>, transform_indices = @transform_7, window_bounds = array<i64: 1, 128>}, {transform_indices = @transform_8, window_bounds = array<i64: 8, 128>}]} {
    %c0 = arith.constant 0 : index
    %c0_0 = arith.constant 0 : index
    %0 = vector.load %arg1[%c0, %c0_0] : memref<8x256xf32, #tpu.memory_space<vmem>>, vector<8x256xf32>
    %1 = arith.truncf %0 : vector<8x256xf32> to vector<8x256xbf16>
    %c0_1 = arith.constant 0 : index
    %c0_2 = arith.constant 0 : index
    %2 = vector.load %arg3[%c0_1, %c0_2] : memref<256x128xbf16, #tpu.memory_space<vmem>>, vector<256x128xbf16>
    %cst = arith.constant dense<0.000000e+00> : vector<8x128xf32>
    %3 = tpu.matmul %1, %2, %cst {dimension_numbers = #tpu.dot_dimension_numbers<[1], [0], [0], [1], [0, 0, 1, 1], [], []>} : vector<8x256xbf16>, vector<256x128xbf16>, vector<8x128xf32> -> vector<8x128xf32>
    %c0_3 = arith.constant 0 : index
    %c0_4 = arith.constant 0 : index
    %4 = vector.load %arg4[%c0_3, %c0_4] : memref<1x128xf32, #tpu.memory_space<vmem>>, vector<1x128xf32>
    %5 = vector.broadcast %4 : vector<1x128xf32> to vector<8x128xf32>
    %6 = arith.addf %3, %5 : vector<8x128xf32>
    %cst_5 = arith.constant 0.000000e+00 : f32
    %7 = vector.broadcast %cst_5 : f32 to vector<8x128xf32>
    %8 = arith.maximumf %6, %7 : vector<8x128xf32>
    %9 = arith.truncf %8 : vector<8x128xf32> to vector<8x128xbf16>
    %c0_6 = arith.constant 0 : index
    %c0_7 = arith.constant 0 : index
    %10 = vector.load %arg5[%c0_6, %c0_7] : memref<128x128xbf16, #tpu.memory_space<vmem>>, vector<128x128xbf16>
    %cst_8 = arith.constant dense<0.000000e+00> : vector<8x128xf32>
    %11 = tpu.matmul %9, %10, %cst_8 {dimension_numbers = #tpu.dot_dimension_numbers<[1], [0], [0], [1], [0, 0, 1, 1], [], []>} : vector<8x128xbf16>, vector<128x128xbf16>, vector<8x128xf32> -> vector<8x128xf32>
    %c0_9 = arith.constant 0 : index
    %c0_10 = arith.constant 0 : index
    %12 = vector.load %arg6[%c0_9, %c0_10] : memref<1x128xf32, #tpu.memory_space<vmem>>, vector<1x128xf32>
    %13 = vector.broadcast %12 : vector<1x128xf32> to vector<8x128xf32>
    %14 = arith.addf %11, %13 : vector<8x128xf32>
    %cst_11 = arith.constant 0.000000e+00 : f32
    %15 = vector.broadcast %cst_11 : f32 to vector<8x128xf32>
    %16 = arith.maximumf %14, %15 : vector<8x128xf32>
    %17 = arith.truncf %16 : vector<8x128xf32> to vector<8x128xbf16>
    %c0_12 = arith.constant 0 : index
    %c0_13 = arith.constant 0 : index
    %18 = vector.load %arg7[%c0_12, %c0_13] : memref<128x128xbf16, #tpu.memory_space<vmem>>, vector<128x128xbf16>
    %cst_14 = arith.constant dense<0.000000e+00> : vector<8x128xf32>
    %19 = tpu.matmul %17, %18, %cst_14 {dimension_numbers = #tpu.dot_dimension_numbers<[1], [0], [0], [1], [0, 0, 1, 1], [], []>} : vector<8x128xbf16>, vector<128x128xbf16>, vector<8x128xf32> -> vector<8x128xf32>
    %c0_15 = arith.constant 0 : index
    %c0_16 = arith.constant 0 : index
    %20 = vector.load %arg8[%c0_15, %c0_16] : memref<1x128xf32, #tpu.memory_space<vmem>>, vector<1x128xf32>
    %21 = vector.broadcast %20 : vector<1x128xf32> to vector<8x128xf32>
    %22 = arith.addf %19, %21 : vector<8x128xf32>
    %c0_17 = arith.constant 0 : index
    %c0_18 = arith.constant 0 : index
    %23 = vector.load %arg2[%c0_17, %c0_18] : memref<8x1xf32, #tpu.memory_space<vmem>>, vector<8x1xf32>
    %24 = vector.broadcast %23 : vector<8x1xf32> to vector<8x128xf32>
    %25 = arith.mulf %22, %24 : vector<8x128xf32>
    %c0_19 = arith.constant 0 : index
    %c0_20 = arith.constant 0 : index
    %26 = vector.load %arg9[%c0_19, %c0_20] : memref<8x128xf32, #tpu.memory_space<vmem>>, vector<8x128xf32>
    tpu.vector_store %arg9[%c0_19, %c0_20], %25 {strides = array<i32>} : memref<8x128xf32, #tpu.memory_space<vmem>>, vector<8x128xf32>,
    return
  }
  func.func @transform_0(%arg0: i32) -> (i32, i32) {
    %c0_i32 = arith.constant 0 : i32
    %c0_i32_0 = arith.constant 0 : i32
    return %arg0, %c0_i32 : i32, i32
  }
  func.func @transform_1(%arg0: i32) -> (i32, i32) {
    %c0_i32 = arith.constant 0 : i32
    %c0_i32_0 = arith.constant 0 : i32
    return %arg0, %c0_i32 : i32, i32
  }
  func.func @transform_2(%arg0: i32) -> (i32, i32) {
    %c0_i32 = arith.constant 0 : i32
    %c0_i32_0 = arith.constant 0 : i32
    %c0_i32_1 = arith.constant 0 : i32
    return %c0_i32, %c0_i32_0 : i32, i32
  }
  func.func @transform_3(%arg0: i32) -> (i32, i32) {
    %c0_i32 = arith.constant 0 : i32
    %c0_i32_0 = arith.constant 0 : i32
    %c0_i32_1 = arith.constant 0 : i32
    return %c0_i32, %c0_i32_0 : i32, i32
  }
  func.func @transform_4(%arg0: i32) -> (i32, i32) {
    %c0_i32 = arith.constant 0 : i32
    %c0_i32_0 = arith.constant 0 : i32
    %c0_i32_1 = arith.constant 0 : i32
    return %c0_i32, %c0_i32_0 : i32, i32
  }
  func.func @transform_5(%arg0: i32) -> (i32, i32) {
    %c0_i32 = arith.constant 0 : i32
    %c0_i32_0 = arith.constant 0 : i32
    %c0_i32_1 = arith.constant 0 : i32
    return %c0_i32, %c0_i32_0 : i32, i32
  }
  func.func @transform_6(%arg0: i32) -> (i32, i32) {
    %c0_i32 = arith.constant 0 : i32
    %c0_i32_0 = arith.constant 0 : i32
    %c0_i32_1 = arith.constant 0 : i32
    return %c0_i32, %c0_i32_0 : i32, i32
  }
  func.func @transform_7(%arg0: i32) -> (i32, i32) {
    %c0_i32 = arith.constant 0 : i32
    %c0_i32_0 = arith.constant 0 : i32
    %c0_i32_1 = arith.constant 0 : i32
    return %c0_i32, %c0_i32_0 : i32, i32
  }
  func.func @transform_8(%arg0: i32) -> (i32, i32) {
    %c0_i32 = arith.constant 0 : i32
    %c0_i32_0 = arith.constant 0 : i32
    return %arg0, %c0_i32 : i32, i32
  }
}

</mosaic_0001>

<llo_original>
// kernel: gaze_adaptor_forward.1
$region0: #{gaze_adaptor_forward.1}
  #allocation0 [shape = 'u32[]', space=smem, size = 0x4, offset = 0x4, fixed_abs, tag = 'smem constant byte address 0x4 - core index']
  #allocation1 [shape = 'u32[144,128]{1,0:T(1,128)}', space=vmem, size = 0x12000, scoped, tag = 'internal scratch']
  %s0 = inlined_call_operand.vmem [shape: f32[8,256], index: 0, kind: input, shape index: {}]
  %s1 = inlined_call_operand.vmem [shape: f32[8,1], index: 1, kind: input, shape index: {}]
  %s2 = inlined_call_operand.vmem [shape: bf16[256,128], index: 2, kind: input, shape index: {}]
  %s3 = inlined_call_operand.vmem [shape: f32[1,128], index: 3, kind: input, shape index: {}]
  %s4 = inlined_call_operand.vmem [shape: bf16[128,128], index: 4, kind: input, shape index: {}]
  %s5 = inlined_call_operand.vmem [shape: f32[1,128], index: 5, kind: input, shape index: {}]
  %s6 = inlined_call_operand.vmem [shape: bf16[128,128], index: 6, kind: input, shape index: {}]
  %s7 = inlined_call_operand.vmem [shape: f32[1,128], index: 7, kind: input, shape index: {}]
  %s8 = inlined_call_operand.vmem [shape: f32[8,128], index: 8, kind: output, shape index: {}]
  %s9 = sld [smem:[#allocation0]]
  $region42: #{gaze_adaptor_forward.1} parent=0
    _
  %s11 = ssub.s32 1, %s9
  %s12 = scalar_select 0, %s11, %s9
  // Predicated region
  $region2: #{gaze_adaptor_forward.1} parent=0 // pred_check
    _
  $region3: #{gaze_adaptor_forward.1} parent=0 // pred_check_branch
    %14 = sbr.rel (0) target = $region5
  $region4: #{gaze_adaptor_forward.1} parent=0 // pred_region
    _
  $region5: #{gaze_adaptor_forward.1} parent=0 // pred_fallthru
    _
  // Predicated region
  $region6: #{gaze_adaptor_forward.1} parent=0 // pred_check
    _
  $region7: #{gaze_adaptor_forward.1} parent=0 // pred_check_branch
    %16 = sbr.rel (0) target = $region9
  $region8: #{gaze_adaptor_forward.1} parent=0 // pred_region
    _
  $region9: #{gaze_adaptor_forward.1} parent=0 // pred_fallthru
    _
  // Predicated region
  $region10: #{gaze_adaptor_forward.1} parent=0 // pred_check
    _
  $region11: #{gaze_adaptor_forward.1} parent=0 // pred_check_branch
    %18 = sbr.rel (0) target = $region13
  $region12: #{gaze_adaptor_forward.1} parent=0 // pred_region
    _
  $region13: #{gaze_adaptor_forward.1} parent=0 // pred_fallthru
    _
  // Predicated region
  $region14: #{gaze_adaptor_forward.1} parent=0 // pred_check
    _
  $region15: #{gaze_adaptor_forward.1} parent=0 // pred_check_branch
    %20 = sbr.rel (0) target = $region17
  $region16: #{gaze_adaptor_forward.1} parent=0 // pred_region
    _
  $region17: #{gaze_adaptor_forward.1} parent=0 // pred_fallthru
    _
  // Predicated region
  $region18: #{gaze_adaptor_forward.1} parent=0 // pred_check
    _
  $region19: #{gaze_adaptor_forward.1} parent=0 // pred_check_branch
    %22 = sbr.rel (0) target = $region21
  $region20: #{gaze_adaptor_forward.1} parent=0 // pred_region
    _
  $region21: #{gaze_adaptor_forward.1} parent=0 // pred_fallthru
    _
  // Predicated region
  $region22: #{gaze_adaptor_forward.1} parent=0 // pred_check
    _
  $region23: #{gaze_adaptor_forward.1} parent=0 // pred_check_branch
    %24 = sbr.rel (0) target = $region25
  $region24: #{gaze_adaptor_forward.1} parent=0 // pred_region
    _
  $region25: #{gaze_adaptor_forward.1} parent=0 // pred_fallthru
    _
  // Predicated region
  $region26: #{gaze_adaptor_forward.1} parent=0 // pred_check
    _
  $region27: #{gaze_adaptor_forward.1} parent=0 // pred_check_branch
    %26 = sbr.rel (0) target = $region29
  $region28: #{gaze_adaptor_forward.1} parent=0 // pred_region
    _
  $region29: #{gaze_adaptor_forward.1} parent=0 // pred_fallthru
    _
  // Predicated region
  $region30: #{gaze_adaptor_forward.1} parent=0 // pred_check
    _
  $region31: #{gaze_adaptor_forward.1} parent=0 // pred_check_branch
    %28 = sbr.rel (0) target = $region33
  $region32: #{gaze_adaptor_forward.1} parent=0 // pred_region
    _
  $region33: #{gaze_adaptor_forward.1} parent=0 // pred_fallthru
    _
  %v30 = vld [vmem:[%s0] sm:$0xff]
  %v31 = vld [vmem:[%s0 + $0x8] sm:$0xff]
  %v32 = vpack.c.bf16 %v30, %v30
  %v33 = vpack.c.bf16 %v31, %v31
  %v34 = vld [vmem:[%s2] sm:$0xf]
  %v35 = vld [vmem:[%s2 + $0x4] sm:$0xf]
  %v36 = vld [vmem:[%s2 + $0x8] sm:$0xf]
  %v37 = vld [vmem:[%s2 + $0xc] sm:$0xf]
  %v38 = vld [vmem:[%s2 + $0x10] sm:$0xf]
  %v39 = vld [vmem:[%s2 + $0x14] sm:$0xf]
  %v40 = vld [vmem:[%s2 + $0x18] sm:$0xf]
  %v41 = vld [vmem:[%s2 + $0x1c] sm:$0xf]
  %v42 = vld [vmem:[%s2 + $0x20] sm:$0xf]
  %v43 = vld [vmem:[%s2 + $0x24] sm:$0xf]
  %v44 = vld [vmem:[%s2 + $0x28] sm:$0xf]
  %v45 = vld [vmem:[%s2 + $0x2c] sm:$0xf]
  %v46 = vld [vmem:[%s2 + $0x30] sm:$0xf]
  %v47 = vld [vmem:[%s2 + $0x34] sm:$0xf]
  %v48 = vld [vmem:[%s2 + $0x38] sm:$0xf]
  %v49 = vld [vmem:[%s2 + $0x3c] sm:$0xf]
  %v50 = vld [vmem:[%s2 + $0x40] sm:$0xf]
  %v51 = vld [vmem:[%s2 + $0x44] sm:$0xf]
  %v52 = vld [vmem:[%s2 + $0x48] sm:$0xf]
  %v53 = vld [vmem:[%s2 + $0x4c] sm:$0xf]
  %v54 = vld [vmem:[%s2 + $0x50] sm:$0xf]
  %v55 = vld [vmem:[%s2 + $0x54] sm:$0xf]
  %v56 = vld [vmem:[%s2 + $0x58] sm:$0xf]
  %v57 = vld [vmem:[%s2 + $0x5c] sm:$0xf]
  %v58 = vld [vmem:[%s2 + $0x60] sm:$0xf]
  %v59 = vld [vmem:[%s2 + $0x64] sm:$0xf]
  %v60 = vld [vmem:[%s2 + $0x68] sm:$0xf]
  %v61 = vld [vmem:[%s2 + $0x6c] sm:$0xf]
  %v62 = vld [vmem:[%s2 + $0x70] sm:$0xf]
  %v63 = vld [vmem:[%s2 + $0x74] sm:$0xf]
  %v64 = vld [vmem:[%s2 + $0x78] sm:$0xf]
  %v65 = vld [vmem:[%s2 + $0x7c] sm:$0xf]
  %v66 = vld [vmem:[%s3] sm:$0x1]
  %v68 = vlaneseq
  %v69 = vshrl.u32 %v68, 7
  %v70 = vsub.s32 0, %v69
  %v71 = vrot.slane %v66, %v70
  %v105 = vunpack.c.l.b16 %v34
  %v106 = vunpack.c.l.b16 %v35
  %v107 = vunpack.c.l.b16 %v36
  %v108 = vunpack.c.l.b16 %v37
  %v109 = vunpack.c.l.b16 %v38
  %v110 = vunpack.c.l.b16 %v39
  %v111 = vunpack.c.l.b16 %v40
  %v112 = vunpack.c.l.b16 %v41
  %v113 = vunpack.c.l.b16 %v42
  %v114 = vunpack.c.l.b16 %v43
  %v115 = vunpack.c.l.b16 %v44
  %v116 = vunpack.c.l.b16 %v45
  %v117 = vunpack.c.l.b16 %v46
  %v118 = vunpack.c.l.b16 %v47
  %v119 = vunpack.c.l.b16 %v48
  %v120 = vunpack.c.l.b16 %v49
  %v121 = vunpack.c.l.b16 %v50
  %v122 = vunpack.c.l.b16 %v51
  %v123 = vunpack.c.l.b16 %v52
  %v124 = vunpack.c.l.b16 %v53
  %v125 = vunpack.c.l.b16 %v54
  %v126 = vunpack.c.l.b16 %v55
  %v127 = vunpack.c.l.b16 %v56
  %v128 = vunpack.c.l.b16 %v57
  %v129 = vunpack.c.l.b16 %v58
  %v130 = vunpack.c.l.b16 %v59
  %v131 = vunpack.c.l.b16 %v60
  %v132 = vunpack.c.l.b16 %v61
  %v133 = vunpack.c.l.b16 %v62
  %v134 = vunpack.c.l.b16 %v63
  %v135 = vunpack.c.l.b16 %v64
  %v136 = vunpack.c.l.b16 %v65
  %v137 = vpack.c.b16 %v106, %v105
  %v138 = vpack.c.b16 %v108, %v107
  %v139 = vpack.c.b16 %v110, %v109
  %v140 = vpack.c.b16 %v112, %v111
  %v141 = vpack.c.b16 %v114, %v113
  %v142 = vpack.c.b16 %v116, %v115
  %v143 = vpack.c.b16 %v118, %v117
  %v144 = vpack.c.b16 %v120, %v119
  %v145 = vpack.c.b16 %v122, %v121
  %v146 = vpack.c.b16 %v124, %v123
  %v147 = vpack.c.b16 %v126, %v125
  %v148 = vpack.c.b16 %v128, %v127
  %v149 = vpack.c.b16 %v130, %v129
  %v150 = vpack.c.b16 %v132, %v131
  %v151 = vpack.c.b16 %v134, %v133
  %v152 = vpack.c.b16 %v136, %v135
  %169 = vmatprep.subr.bf16.mxu0 0
  %170 = vmatpush1.bf16.msra.mxu0 %v137
  %171 = vmatprep.subr.bf16.mxu0 0
  %172 = vmatpush1.bf16.msra.mxu0 %v138
  %173 = vmatprep.subr.bf16.mxu0 0
  %174 = vmatpush1.bf16.msra.mxu0 %v139
  %175 = vmatprep.subr.bf16.mxu0 0
  %176 = vmatpush1.bf16.msra.mxu0 %v140
  %177 = vmatprep.subr.bf16.mxu0 0
  %178 = vmatpush1.bf16.msra.mxu0 %v141
  %179 = vmatprep.subr.bf16.mxu0 0
  %180 = vmatpush1.bf16.msra.mxu0 %v142
  %181 = vmatprep.subr.bf16.mxu0 0
  %182 = vmatpush1.bf16.msra.mxu0 %v143
  %183 = vmatprep.subr.bf16.mxu0 0
  %184 = vmatpush1.bf16.msra.mxu0 %v144
  %185 = vmatprep.subr.bf16.mxu0 0
  %186 = vmatpush1.bf16.msra.mxu0 %v145
  %187 = vmatprep.subr.bf16.mxu0 0
  %188 = vmatpush1.bf16.msra.mxu0 %v146
  %189 = vmatprep.subr.bf16.mxu0 0
  %190 = vmatpush1.bf16.msra.mxu0 %v147
  %191 = vmatprep.subr.bf16.mxu0 0
  %192 = vmatpush1.bf16.msra.mxu0 %v148
  %193 = vmatprep.subr.bf16.mxu0 0
  %194 = vmatpush1.bf16.msra.mxu0 %v149
  %195 = vmatprep.subr.bf16.mxu0 0
  %196 = vmatpush1.bf16.msra.mxu0 %v150
  %197 = vmatprep.subr.bf16.mxu0 0
  %198 = vmatpush1.bf16.msra.mxu0 %v151
  %199 = vmatprep.subr.bf16.mxu0 0
  %200 = vmatpush1.bf16.msra.mxu0 %v152
  %201 = vmatprep.mubr.bf16.mxu0 %v33
  %202 = vmatmul.mubr.bf16.gmra.mrb[0].mxu0 %v32
  %v203 = vpop.f32.mrb[0].mxu0
  %v204 = vadd.f32 %v71, %v203
  %v205 = vpop.f32.mrb[0].mxu0
  %v206 = vpop.f32.mrb[0].mxu0
  %v207 = vpop.f32.mrb[0].mxu0
  %208 = vdwg.mxu0
  %v209 = vmax.f32 %v204, 0.0
  %v210 = vpack.c.bf16 %v209, %v209
  %v211 = vld [vmem:[%s4] sm:$0xf]
  %v212 = vld [vmem:[%s4 + $0x4] sm:$0xf]
  %v213 = vld [vmem:[%s4 + $0x8] sm:$0xf]
  %v214 = vld [vmem:[%s4 + $0xc] sm:$0xf]
  %v215 = vld [vmem:[%s4 + $0x10] sm:$0xf]
  %v216 = vld [vmem:[%s4 + $0x14] sm:$0xf]
  %v217 = vld [vmem:[%s4 + $0x18] sm:$0xf]
  %v218 = vld [vmem:[%s4 + $0x1c] sm:$0xf]
  %v219 = vld [vmem:[%s4 + $0x20] sm:$0xf]
  %v220 = vld [vmem:[%s4 + $0x24] sm:$0xf]
  %v221 = vld [vmem:[%s4 + $0x28] sm:$0xf]
  %v222 = vld [vmem:[%s4 + $0x2c] sm:$0xf]
  %v223 = vld [vmem:[%s4 + $0x30] sm:$0xf]
  %v224 = vld [vmem:[%s4 + $0x34] sm:$0xf]
  %v225 = vld [vmem:[%s4 + $0x38] sm:$0xf]
  %v226 = vld [vmem:[%s4 + $0x3c] sm:$0xf]
  %v227 = vld [vmem:[%s5] sm:$0x1]
  %v229 = vlaneseq
  %v230 = vshrl.u32 %v229, 7
  %v231 = vsub.s32 0, %v230
  %v232 = vrot.slane %v227, %v231
  %v250 = vunpack.c.l.b16 %v211
  %v251 = vunpack.c.l.b16 %v212
  %v252 = vunpack.c.l.b16 %v213
  %v253 = vunpack.c.l.b16 %v214
  %v254 = vunpack.c.l.b16 %v215
  %v255 = vunpack.c.l.b16 %v216
  %v256 = vunpack.c.l.b16 %v217
  %v257 = vunpack.c.l.b16 %v218
  %v258 = vunpack.c.l.b16 %v219
  %v259 = vunpack.c.l.b16 %v220
  %v260 = vunpack.c.l.b16 %v221
  %v261 = vunpack.c.l.b16 %v222
  %v262 = vunpack.c.l.b16 %v223
  %v263 = vunpack.c.l.b16 %v224
  %v264 = vunpack.c.l.b16 %v225
  %v265 = vunpack.c.l.b16 %v226
  %v266 = vpack.c.b16 %v251, %v250
  %v267 = vpack.c.b16 %v253, %v252
  %v268 = vpack.c.b16 %v255, %v254
  %v269 = vpack.c.b16 %v257, %v256
  %v270 = vpack.c.b16 %v259, %v258
  %v271 = vpack.c.b16 %v261, %v260
  %v272 = vpack.c.b16 %v263, %v262
  %v273 = vpack.c.b16 %v265, %v264
  %282 = vmatprep.subr.bf16.mxu0 0
  %283 = vmatpush1.bf16.msra.mxu0 %v266
  %284 = vmatprep.subr.bf16.mxu0 0
  %285 = vmatpush1.bf16.msra.mxu0 %v267
  %286 = vmatprep.subr.bf16.mxu0 0
  %287 = vmatpush1.bf16.msra.mxu0 %v268
  %288 = vmatprep.subr.bf16.mxu0 0
  %289 = vmatpush1.bf16.msra.mxu0 %v269
  %290 = vmatprep.subr.bf16.mxu0 0
  %291 = vmatpush1.bf16.msra.mxu0 %v270
  %292 = vmatprep.subr.bf16.mxu0 0
  %293 = vmatpush1.bf16.msra.mxu0 %v271
  %294 = vmatprep.subr.bf16.mxu0 0
  %295 = vmatpush1.bf16.msra.mxu0 %v272
  %296 = vmatprep.subr.bf16.mxu0 0
  %297 = vmatpush1.bf16.msra.mxu0 %v273
  %298 = vmatprep.subr.bf16.mxu0 0
  %299 = vmatpush1.bf16.msra.mxu0 0
  %300 = vmatprep.subr.bf16.mxu0 0
  %301 = vmatpush1.bf16.msra.mxu0 0
  %302 = vmatprep.subr.bf16.mxu0 0
  %303 = vmatpush1.bf16.msra.mxu0 0
  %304 = vmatprep.subr.bf16.mxu0 0
  %305 = vmatpush1.bf16.msra.mxu0 0
  %306 = vmatprep.subr.bf16.mxu0 0
  %307 = vmatpush1.bf16.msra.mxu0 0
  %308 = vmatprep.subr.bf16.mxu0 0
  %309 = vmatpush1.bf16.msra.mxu0 0
  %310 = vmatprep.subr.bf16.mxu0 0
  %311 = vmatpush1.bf16.msra.mxu0 0
  %312 = vmatprep.subr.bf16.mxu0 0
  %313 = vmatpush1.bf16.msra.mxu0 0
  %314 = vmatprep.mubr.bf16.mxu0 0
  %315 = vmatmul.mubr.bf16.gmra.mrb[0].mxu0 %v210
  %v316 = vpop.f32.mrb[0].mxu0
  %v317 = vadd.f32 %v232, %v316
  %v318 = vpop.f32.mrb[0].mxu0
  %v319 = vpop.f32.mrb[0].mxu0
  %v320 = vpop.f32.mrb[0].mxu0
  %321 = vdwg.mxu0
  %v322 = vmax.f32 %v317, 0.0
  %v323 = vpack.c.bf16 %v322, %v322
  %v324 = vld [vmem:[%s6] sm:$0xf]
  %v325 = vld [vmem:[%s6 + $0x4] sm:$0xf]
  %v326 = vld [vmem:[%s6 + $0x8] sm:$0xf]
  %v327 = vld [vmem:[%s6 + $0xc] sm:$0xf]
  %v328 = vld [vmem:[%s6 + $0x10] sm:$0xf]
  %v329 = vld [vmem:[%s6 + $0x14] sm:$0xf]
  %v330 = vld [vmem:[%s6 + $0x18] sm:$0xf]
  %v331 = vld [vmem:[%s6 + $0x1c] sm:$0xf]
  %v332 = vld [vmem:[%s6 + $0x20] sm:$0xf]
  %v333 = vld [vmem:[%s6 + $0x24] sm:$0xf]
  %v334 = vld [vmem:[%s6 + $0x28] sm:$0xf]
  %v335 = vld [vmem:[%s6 + $0x2c] sm:$0xf]
  %v336 = vld [vmem:[%s6 + $0x30] sm:$0xf]
  %v337 = vld [vmem:[%s6 + $0x34] sm:$0xf]
  %v338 = vld [vmem:[%s6 + $0x38] sm:$0xf]
  %v339 = vld [vmem:[%s6 + $0x3c] sm:$0xf]
  %v340 = vld [vmem:[%s7] sm:$0x1]
  %v342 = vlaneseq
  %v343 = vshrl.u32 %v342, 7
  %v344 = vsub.s32 0, %v343
  %v345 = vrot.slane %v340, %v344
  %v363 = vunpack.c.l.b16 %v324
  %v364 = vunpack.c.l.b16 %v325
  %v365 = vunpack.c.l.b16 %v326
  %v366 = vunpack.c.l.b16 %v327
  %v367 = vunpack.c.l.b16 %v328
  %v368 = vunpack.c.l.b16 %v329
  %v369 = vunpack.c.l.b16 %v330
  %v370 = vunpack.c.l.b16 %v331
  %v371 = vunpack.c.l.b16 %v332
  %v372 = vunpack.c.l.b16 %v333
  %v373 = vunpack.c.l.b16 %v334
  %v374 = vunpack.c.l.b16 %v335
  %v375 = vunpack.c.l.b16 %v336
  %v376 = vunpack.c.l.b16 %v337
  %v377 = vunpack.c.l.b16 %v338
  %v378 = vunpack.c.l.b16 %v339
  %v379 = vpack.c.b16 %v364, %v363
  %v380 = vpack.c.b16 %v366, %v365
  %v381 = vpack.c.b16 %v368, %v367
  %v382 = vpack.c.b16 %v370, %v369
  %v383 = vpack.c.b16 %v372, %v371
  %v384 = vpack.c.b16 %v374, %v373
  %v385 = vpack.c.b16 %v376, %v375
  %v386 = vpack.c.b16 %v378, %v377
  %395 = vmatprep.subr.bf16.mxu0 0
  %396 = vmatpush1.bf16.msra.mxu0 %v379
  %397 = vmatprep.subr.bf16.mxu0 0
  %398 = vmatpush1.bf16.msra.mxu0 %v380
  %399 = vmatprep.subr.bf16.mxu0 0
  %400 = vmatpush1.bf16.msra.mxu0 %v381
  %401 = vmatprep.subr.bf16.mxu0 0
  %402 = vmatpush1.bf16.msra.mxu0 %v382
  %403 = vmatprep.subr.bf16.mxu0 0
  %404 = vmatpush1.bf16.msra.mxu0 %v383
  %405 = vmatprep.subr.bf16.mxu0 0
  %406 = vmatpush1.bf16.msra.mxu0 %v384
  %407 = vmatprep.subr.bf16.mxu0 0
  %408 = vmatpush1.bf16.msra.mxu0 %v385
  %409 = vmatprep.subr.bf16.mxu0 0
  %410 = vmatpush1.bf16.msra.mxu0 %v386
  %411 = vmatprep.subr.bf16.mxu0 0
  %412 = vmatpush1.bf16.msra.mxu0 0
  %413 = vmatprep.subr.bf16.mxu0 0
  %414 = vmatpush1.bf16.msra.mxu0 0
  %415 = vmatprep.subr.bf16.mxu0 0
  %416 = vmatpush1.bf16.msra.mxu0 0
  %417 = vmatprep.subr.bf16.mxu0 0
  %418 = vmatpush1.bf16.msra.mxu0 0
  %419 = vmatprep.subr.bf16.mxu0 0
  %420 = vmatpush1.bf16.msra.mxu0 0
  %421 = vmatprep.subr.bf16.mxu0 0
  %422 = vmatpush1.bf16.msra.mxu0 0
  %423 = vmatprep.subr.bf16.mxu0 0
  %424 = vmatpush1.bf16.msra.mxu0 0
  %425 = vmatprep.subr.bf16.mxu0 0
  %426 = vmatpush1.bf16.msra.mxu0 0
  %427 = vmatprep.mubr.bf16.mxu0 0
  %428 = vmatmul.mubr.bf16.gmra.mrb[0].mxu0 %v323
  %v429 = vpop.f32.mrb[0].mxu0
  %v430 = vadd.f32 %v345, %v429
  %v431 = vpop.f32.mrb[0].mxu0
  %v432 = vpop.f32.mrb[0].mxu0
  %v433 = vpop.f32.mrb[0].mxu0
  %434 = vdwg.mxu0
  %v435 = vld [vmem:[%s1] sm:$0xff]
  %437 = vset.pattern.permute.xlu0 0
  %438 = vperm.xlu0 %437, %v435
  %v439 = vpop.permute.xlu0 %438
  %v441 = vmul.f32 %v430, %v439
  %442 = vst [vmem:[%s8] sm:$0xff] %v441
  // Predicated region
  $region34: #{gaze_adaptor_forward.1} parent=0 // pred_check
    _
  $region35: #{gaze_adaptor_forward.1} parent=0 // pred_check_branch
    %444 = sbr.rel (0) target = $region37
  $region36: #{gaze_adaptor_forward.1} parent=0 // pred_region
    _
  $region37: #{gaze_adaptor_forward.1} parent=0 // pred_fallthru
    _
  // Predicated region
  $region38: #{gaze_adaptor_forward.1} parent=0 // pred_check
    _
  $region39: #{gaze_adaptor_forward.1} parent=0 // pred_check_branch
    %446 = sbr.rel (0) target = $region41
  $region40: #{gaze_adaptor_forward.1} parent=0 // pred_region
    _
  $region41: #{gaze_adaptor_forward.1} parent=0 // pred_fallthru
    _

</llo_original>
